<compile_context>
chip_gen: v6e
topology: v6e:2x2x1
jax: 0.10.0
libtpu: 0.0.40
codegen_flags: <defaults>
</compile_context>

<pallas_src>
import functools

import jax
import jax.numpy as jnp
from jax.experimental import pallas as pl
from jax.experimental.pallas import tpu as pltpu

EPS = 1e-5          # PyTorch InstanceNorm2d default eps
NEG_SLOPE = 0.2     # LeakyReLU negative slope


def unet_down_kernel(p_ref, w_ref, o_ref, *, normalize):
    """One grid step = one batch image.

    p_ref: (1, K, M)     im2col patches, K = kh*kw*Cin on sublanes, M = Ho*Wo on lanes
    w_ref: (Cout, K)     packed conv weights
    o_ref: (1, Cout, M)  lane-dense output slab
    """
    patches = p_ref[0]                        # (K, M)
    w = w_ref[...]                            # (Cout, K)

    # 4x4 stride-2 conv (bias=False) as a single MXU matmul.
    y = jnp.dot(w, patches, preferred_element_type=jnp.float32)   # (Cout, M)

    if normalize:
        # InstanceNorm2d (affine=False): per-channel stats over the spatial lanes,
        # fused single reduction pass, biased variance (matches PyTorch).
        inv_m = 1.0 / y.shape[-1]
        s = jnp.sum(y, axis=-1, keepdims=True)
        ss = jnp.sum(y * y, axis=-1, keepdims=True)
        mean = s * inv_m
        var = ss * inv_m - mean * mean
        y = (y - mean) * jax.lax.rsqrt(var + EPS)

    # LeakyReLU(0.2)
    y = jnp.maximum(y, NEG_SLOPE * y)
    o_ref[0] = y.astype(o_ref.dtype)


def unet_down(x_nchw, weight, *, normalize=True):
    """UNetDown forward.

    x_nchw: (N, Cin, H, W) float32 (PyTorch layout), weight: (Cout, Cin, 4, 4) OIHW.
    Returns (N, Cout, H//2, W//2).
    """
    # TODO(synk): nn.Dropout(p>0) in training mode (random masking) is not implemented;
    # the module default dropout=0.0 makes it the identity, which is what we compute.
    N, Cin, H, W = x_nchw.shape
    Cout = weight.shape[0]
    Ho, Wo = H // 2, W // 2
    K = Cin * 16             # kh * kw * Cin
    M = Ho * Wo              # lane axis, kept >= 128 for dense vregs / dense stores

    # --- wrapper-side layout plumbing (zero pad, im2col, weight packing) ---
    xp = jnp.pad(x_nchw, ((0, 0), (0, 0), (1, 1), (1, 1)))        # Conv2d padding=1 (zeros)
    taps = [xp[:, :, dy:dy + 2 * Ho:2, dx:dx + 2 * Wo:2]          # stride-2 taps, (N,Cin,Ho,Wo)
            for dy in range(4) for dx in range(4)]
    patches = jnp.stack(taps, axis=2).reshape(N, K, M)            # (N, Cin*16, Ho*Wo)
    w_packed = weight.reshape(Cout, K)                            # same (c, dy, dx) ordering

    kernel = functools.partial(unet_down_kernel, normalize=normalize)

    out = pl.pallas_call(
        kernel,
        out_shape=jax.ShapeDtypeStruct((N, Cout, M), x_nchw.dtype),
        grid=(N,),
        in_specs=[pl.BlockSpec((1, K, M), lambda n: (n, 0, 0)),
                  pl.BlockSpec((Cout, K), lambda n: (0, 0))],
        out_specs=pl.BlockSpec((1, Cout, M), lambda n: (n, 0, 0)),
        compiler_params=pltpu.CompilerParams(
            dimension_semantics=("parallel",)),
    )(patches, w_packed)

    return out.reshape(N, Cout, Ho, Wo)


# ----------------------------- pure-JAX reference -----------------------------

def unet_down_ref(x, weight, *, normalize=True):
    y = jax.lax.conv_general_dilated(
        x, weight, window_strides=(2, 2), padding=((1, 1), (1, 1)),
        dimension_numbers=("NCHW", "OIHW", "NCHW"))
    if normalize:
        mean = jnp.mean(y, axis=(2, 3), keepdims=True)
        var = jnp.mean((y - mean) ** 2, axis=(2, 3), keepdims=True)
        y = (y - mean) * jax.lax.rsqrt(var + EPS)
    return jnp.where(y > 0, y, NEG_SLOPE * y)


# ----------------------------- main -------------------------------------------

if __name__ == "__main__":
    # Small shapes: in_size=4 -> out_size=8, batch=2, spatial 32 -> 16 after the
    # stride-2 conv, so the per-image spatial slab Ho*Wo = 256 is lane-dense.
    N, Cin, Cout, H, W = 2, 4, 8, 32, 32

    key = jax.random.PRNGKey(0)
    kx, kw = jax.random.split(key)
    x = jax.random.normal(kx, (N, Cin, H, W), dtype=jnp.float32)
    w = 0.1 * jax.random.normal(kw, (Cout, Cin, 4, 4), dtype=jnp.float32)

    out = jax.block_until_ready(unet_down(x, w))
    ref = jax.block_until_ready(unet_down_ref(x, w))

    assert out.shape == (N, Cout, H // 2, W // 2)
    err = float(jnp.max(jnp.abs(out - ref)))
    assert jnp.allclose(out, ref, atol=2e-4, rtol=1e-3), f"max abs err {err}"

    print("KERNEL_OK")
</pallas_src>

<mosaic_0001>
module attributes {stable_mosaic.version = 11 : i64} {
  func.func @unet_down_kernel(%arg0: i32, %arg1: memref<1x64x256xf32, #tpu.memory_space<vmem>>, %arg2: memref<8x64xf32, #tpu.memory_space<vmem>>, %arg3: memref<1x8x256xf32, #tpu.memory_space<vmem>>) attributes {dimension_semantics = [#tpu.dimension_semantics<parallel>], iteration_bounds = array<i64: 2>, scalar_prefetch = 0 : i64, scratch_operands = 0 : i64, tpu.core_type = #tpu.core_type<tc>, window_params = [{transform_indices = @transform_0, window_bounds = array<i64: 1, 64, 256>}, {pipeline_mode = #tpu.pipeline_mode<synchronous>, transform_indices = @transform_1, window_bounds = array<i64: 8, 64>}, {transform_indices = @transform_2, window_bounds = array<i64: 1, 8, 256>}]} {
    %c0 = arith.constant 0 : index
    %c0_0 = arith.constant 0 : index
    %c0_1 = arith.constant 0 : index
    %0 = vector.load %arg1[%c0, %c0_0, %c0_1] : memref<1x64x256xf32, #tpu.memory_space<vmem>>, vector<1x64x256xf32>
    %1 = vector.shape_cast %0 : vector<1x64x256xf32> to vector<64x256xf32>
    %c0_2 = arith.constant 0 : index
    %c0_3 = arith.constant 0 : index
    %2 = vector.load %arg2[%c0_2, %c0_3] : memref<8x64xf32, #tpu.memory_space<vmem>>, vector<8x64xf32>
    %cst = arith.constant dense<0.000000e+00> : vector<8x256xf32>
    %3 = tpu.matmul %2, %1, %cst {dimension_numbers = #tpu.dot_dimension_numbers<[1], [0], [0], [1], [0, 0, 1, 1], [], []>} : vector<8x64xf32>, vector<64x256xf32>, vector<8x256xf32> -> vector<8x256xf32>
    %cst_4 = arith.constant dense<0.000000e+00> : vector<8xf32>
    %4 = vector.multi_reduction <add>, %3, %cst_4 [1] : vector<8x256xf32> to vector<8xf32>
    %5 = vector.shape_cast %4 : vector<8xf32> to vector<8x1xf32>
    %6 = arith.mulf %3, %3 : vector<8x256xf32>
    %cst_5 = arith.constant dense<0.000000e+00> : vector<8xf32>
    %7 = vector.multi_reduction <add>, %6, %cst_5 [1] : vector<8x256xf32> to vector<8xf32>
    %8 = vector.shape_cast %7 : vector<8xf32> to vector<8x1xf32>
    %cst_6 = arith.constant 3.906250e-03 : f32
    %9 = vector.broadcast %cst_6 : f32 to vector<8x1xf32>
    %10 = arith.mulf %5, %9 : vector<8x1xf32>
    %cst_7 = arith.constant 3.906250e-03 : f32
    %11 = vector.broadcast %cst_7 : f32 to vector<8x1xf32>
    %12 = arith.mulf %8, %11 : vector<8x1xf32>
    %13 = arith.mulf %10, %10 : vector<8x1xf32>
    %14 = arith.subf %12, %13 : vector<8x1xf32>
    %15 = vector.broadcast %10 : vector<8x1xf32> to vector<8x256xf32>
    %16 = arith.subf %3, %15 : vector<8x256xf32>
    %cst_8 = arith.constant 9.99999974E-6 : f32
    %17 = vector.broadcast %cst_8 : f32 to vector<8x1xf32>
    %18 = arith.addf %14, %17 : vector<8x1xf32>
    %19 = math.rsqrt %18 : vector<8x1xf32>
    %20 = vector.broadcast %19 : vector<8x1xf32> to vector<8x256xf32>
    %21 = arith.mulf %16, %20 : vector<8x256xf32>
    %cst_9 = arith.constant 2.000000e-01 : f32
    %22 = vector.broadcast %cst_9 : f32 to vector<8x256xf32>
    %23 = arith.mulf %22, %21 : vector<8x256xf32>
    %24 = arith.maximumf %21, %23 : vector<8x256xf32>
    %c0_10 = arith.constant 0 : index
    %c0_11 = arith.constant 0 : index
    %c0_12 = arith.constant 0 : index
    %25 = vector.load %arg3[%c0_10, %c0_11, %c0_12] : memref<1x8x256xf32, #tpu.memory_space<vmem>>, vector<1x8x256xf32>
    %26 = vector.shape_cast %25 : vector<1x8x256xf32> to vector<8x256xf32>
    %27 = vector.shape_cast %24 : vector<8x256xf32> to vector<1x8x256xf32>
    tpu.vector_store %arg3[%c0_10, %c0_11, %c0_12], %27 {strides = array<i32>} : memref<1x8x256xf32, #tpu.memory_space<vmem>>, vector<1x8x256xf32>,
    return
  }
  func.func @transform_0(%arg0: i32) -> (i32, i32, i32) {
    %c0_i32 = arith.constant 0 : i32
    %c0_i32_0 = arith.constant 0 : i32
    %c0_i32_1 = arith.constant 0 : i32
    return %arg0, %c0_i32, %c0_i32_0 : i32, i32, i32
  }
  func.func @transform_1(%arg0: i32) -> (i32, i32) {
    %c0_i32 = arith.constant 0 : i32
    %c0_i32_0 = arith.constant 0 : i32
    %c0_i32_1 = arith.constant 0 : i32
    return %c0_i32, %c0_i32_0 : i32, i32
  }
  func.func @transform_2(%arg0: i32) -> (i32, i32, i32) {
    %c0_i32 = arith.constant 0 : i32
    %c0_i32_0 = arith.constant 0 : i32
    %c0_i32_1 = arith.constant 0 : i32
    return %arg0, %c0_i32, %c0_i32_0 : i32, i32, i32
  }
}

</mosaic_0001>

<llo_original>
// kernel: tpu_custom_call.1
$region0: #{tpu_custom_call.1}
  #allocation0 [shape = 'u32[]', space=smem, size = 0x4, offset = 0x4, fixed_abs, tag = 'smem constant byte address 0x4 - core index']
  #allocation1 [shape = 'u32[144,128]{1,0:T(1,128)}', space=vmem, size = 0x12000, scoped, tag = 'internal scratch']
  %s0 = inlined_call_operand.hbm [shape: f32[2,64,256], index: 0, kind: input, shape index: {}]
  %s1 = inlined_call_operand.hbm [shape: f32[8,64], index: 1, kind: input, shape index: {}]
  %s2 = inlined_call_operand.hbm [shape: f32[2,8,256], index: 2, kind: output, shape index: {}]
  %s3 = sld [smem:[#allocation0]]
  $region49: #{tpu_custom_call.1} parent=0
    _
  %s5 = ssub.s32 1, %s3
  %s6 = scalar_select 0, %s5, %s3
  $region1: #{tpu_custom_call.1} parent=0
    #allocation2 [shape = 'u8[131072]{0}', space=vmem, size = 0x20000, scoped, tag = 'input window, operand 0']
    #allocation3 [shape = 's32[2]{0}', space=sflag, size = 0x8, scoped, tag = 'scoped memory for tpu_custom_call.1']
    #allocation4 [shape = 's32[2]{0}', space=sflag, size = 0x8, scoped, tag = 'scoped memory for tpu_custom_call.1']
    #allocation5 [shape = 'u8[4096]{0}', space=vmem, size = 0x1000, scoped, tag = 'input window, operand 1, single buffered']
    #allocation6 [shape = 's32[1]{0}', space=sflag, size = 0x4, scoped, tag = 'scoped memory for tpu_custom_call.1']
    #allocation7 [shape = 'u8[16384]{0}', space=vmem, size = 0x4000, scoped, tag = 'output window, operand 0']
    %7 = vsyncpa [#allocation3], 0
    %s8 = scalar_lea.sflag [#allocation3], 1
    %9 = vsyncpa %s8, 0
    %10 = vsyncpa [#allocation6], 0
    %11 = vsyncpa [#allocation4], 0
    %s12 = scalar_lea.sflag [#allocation4], 1
    %13 = vsyncpa %s12, 0
    loop: start=0, step=1, limit=4
    $region2: #{tpu_custom_call.1} parent=1 // loop_pre_header
      _
    $region3: #{tpu_custom_call.1} parent=1 // loop_header
      %s15 = sphi 0, %s19
      %p16 = scmp.ge.s32.totalorder %s15, 4
      %s25 = sphi 0, %s27
      %s28 = sphi 0, %s25
      %s29 = sphi 0, %s28
      %s45 = sphi 0, %s29
      %s49 = sphi 0, %s49
      %s51 = sphi 0, %s49
      %s52 = sphi 0, %s51
      %s66 = sphi 0, %s52
      %s72 = sphi 0, %s74
      %s75 = sphi 0, %s72
      %s76 = sphi 0, %s75
      %s92 = sphi 0, %s76
    $region4: #{tpu_custom_call.1} parent=1 // loop_header_branch
      %18 = sbr.rel (%p16) target = $region8
    $region5: #{tpu_custom_call.1} parent=1 // loop_body
      %s20 = ssub.s32 %s15, 1
      %s21 = ssub.s32 %s15, 2
      %s22 = sadd.s32 %s15, 1
      %s23 = ssub.s32 %s15, %s22
      %p24 = scmp.eq.s32.totalorder %s23, 0
      %s26 = sadd.s32 %s25, 1
      %s27 = scalar_select %p24, %s25, %s26
      %p30 = pneg %p24
      %p31 = scmp.eq.s32.totalorder %s15, 1
      %p32 = por %p30, %p31
      %p33 = scmp.ne.s32.totalorder %s25, %s28
      %p34 = scmp.eq.s32.totalorder %s15, 0
      %p35 = por %p33, %p34
      %p36 = scmp.ne.s32.totalorder %s25, %s28
      %p37 = scmp.eq.s32.totalorder %s20, 1
      %p38 = por %p36, %p37
      %p39 = scmp.ne.s32.totalorder %s28, %s29
      %p40 = scmp.eq.s32.totalorder %s20, 0
      %p41 = por %p39, %p40
      %p42 = scmp.ne.s32.totalorder %s28, %s29
      %p43 = scmp.eq.s32.totalorder %s21, 1
      %p44 = por %p42, %p43
      %p46 = scmp.ne.s32.totalorder %s29, %s45
      %p47 = scmp.eq.s32.totalorder %s21, 0
      %p48 = por %p46, %p47
      %s50 = sadd.s32 %s49, 1
      %p53 = scmp.eq.s32.totalorder %s15, 1
      %p54 = scmp.ne.s32.totalorder %s49, %s51
      %p55 = scmp.eq.s32.totalorder %s15, 0
      %p56 = por %p54, %p55
      %p57 = scmp.ne.s32.totalorder %s49, %s51
      %p58 = scmp.eq.s32.totalorder %s20, 1
      %p59 = por %p57, %p58
      %p60 = scmp.ne.s32.totalorder %s51, %s52
      %p61 = scmp.eq.s32.totalorder %s20, 0
      %p62 = por %p60, %p61
      %p63 = scmp.ne.s32.totalorder %s51, %s52
      %p64 = scmp.eq.s32.totalorder %s21, 1
      %p65 = por %p63, %p64
      %p67 = scmp.ne.s32.totalorder %s52, %s66
      %p68 = scmp.eq.s32.totalorder %s21, 0
      %p69 = por %p67, %p68
      %s70 = ssub.s32 %s15, %s22
      %p71 = scmp.eq.s32.totalorder %s70, 0
      %s73 = sadd.s32 %s72, 1
      %s74 = scalar_select %p71, %s72, %s73
      %p77 = pneg %p71
      %p78 = scmp.eq.s32.totalorder %s15, 1
      %p79 = por %p77, %p78
      %p80 = scmp.ne.s32.totalorder %s72, %s75
      %p81 = scmp.eq.s32.totalorder %s15, 0
      %p82 = por %p80, %p81
      %p83 = scmp.ne.s32.totalorder %s72, %s75
      %p84 = scmp.eq.s32.totalorder %s20, 1
      %p85 = por %p83, %p84
      %p86 = scmp.ne.s32.totalorder %s75, %s76
      %p87 = scmp.eq.s32.totalorder %s20, 0
      %p88 = por %p86, %p87
      %p89 = scmp.ne.s32.totalorder %s75, %s76
      %p90 = scmp.eq.s32.totalorder %s21, 1
      %p91 = por %p89, %p90
      %p93 = scmp.ne.s32.totalorder %s76, %s92
      %p94 = scmp.eq.s32.totalorder %s21, 0
      %p95 = por %p93, %p94
      %p96 = scmp.le.s32.totalorder 1, %s15
      %p97 = scmp.lt.s32.totalorder %s15, 3
      %p98 = pnand %p96, %p97
      %p99 = pneg %p98
      // Predicated region
      $region9: #{tpu_custom_call.1} parent=5 // pred_check
        _
      $region10: #{tpu_custom_call.1} parent=5 // pred_check_branch
        %101 = sbr.rel (%p98) target = $region12
      $region11: #{tpu_custom_call.1} parent=5 // pred_region
        %s102 = ssub.s32 %s15, 1
        // Predicated region
        $region13: #{tpu_custom_call.1} parent=11 // pred_check
          %p103 = pneg %p62
        $region14: #{tpu_custom_call.1} parent=11 // pred_check_branch
          %105 = sbr.rel (%p103) target = $region16
        $region15: #{tpu_custom_call.1} parent=11 // pred_region
          %s107 = ssub.s32 128, 128
          %108 = vsyncadd [#allocation6], %s107
          %s110 = sshll.u32 [#allocation5], 4
          %s111 = int_to_ptr.vmem [resolvable:$true] %s110
          %113 = dma.hbm_to_vmem [thread:$0]  %s1, 128, %s111, [#allocation6]
        $region16: #{tpu_custom_call.1} parent=11 // pred_fallthru
          _
      $region12: #{tpu_custom_call.1} parent=5 // pred_fallthru
        _
      %p114 = scmp.lt.s32.totalorder %s15, 2
      // Predicated region
      $region17: #{tpu_custom_call.1} parent=5 // pred_check
        %p115 = pneg %p114
      $region18: #{tpu_custom_call.1} parent=5 // pred_check_branch
        %117 = sbr.rel (%p115) target = $region20
      $region19: #{tpu_custom_call.1} parent=5 // pred_region
        // Predicated region
        $region21: #{tpu_custom_call.1} parent=19 // pred_check
          %p118 = pneg %p35
        $region22: #{tpu_custom_call.1} parent=19 // pred_check_branch
          %120 = sbr.rel (%p118) target = $region24
        $region23: #{tpu_custom_call.1} parent=19 // pred_region
          %s121 = sand.u32 %s25, 1
          %s122 = scalar_lea.sflag [#allocation3], %s121
          %s123 = sand.u32 %s25, 1
          %s124 = smul.addr %s123, 128
          %s125 = scalar_lea.vmem [#allocation2], %s124
          %s127 = ssub.s32 2048, 2048
          %128 = vsyncadd %s122, %s127
          %s129 = smul.addr %s15, 16
          %s130 = smul.addr %s129, 128
          %s131 = scalar_lea.hbm %s0, %s130
          %s132 = sshll.u32 %s125, 4
          %s133 = int_to_ptr.vmem [resolvable:$true] %s132
          %138 = dma.hbm_to_vmem [thread:$0]  %s131, 2048, %s133, %s122, 256, 256, 16
        $region24: #{tpu_custom_call.1} parent=19 // pred_fallthru
          _
      $region20: #{tpu_custom_call.1} parent=5 // pred_fallthru
        _
      %p139 = scmp.le.s32.totalorder 1, %s15
      %p140 = scmp.lt.s32.totalorder %s15, 3
      %p141 = pnand %p139, %p140
      %p142 = pneg %p141
      // Predicated region
      $region25: #{tpu_custom_call.1} parent=5 // pred_check
        _
      $region26: #{tpu_custom_call.1} parent=5 // pred_check_branch
        %144 = sbr.rel (%p141) target = $region28
      $region27: #{tpu_custom_call.1} parent=5 // pred_region
        %s145 = ssub.s32 %s15, 1
        %s146 = sand.u32 %s28, 1
        %s147 = scalar_lea.sflag [#allocation3], %s146
        %s148 = sand.u32 %s28, 1
        %s149 = smul.addr %s148, 128
        %s150 = scalar_lea.vmem [#allocation2], %s149
        // Predicated region
        $region29: #{tpu_custom_call.1} parent=27 // pred_check
          %p151 = pneg %p41
        $region30: #{tpu_custom_call.1} parent=27 // pred_check_branch
          %153 = sbr.rel (%p151) target = $region32
        $region31: #{tpu_custom_call.1} parent=27 // pred_region
          %154 = dma.done %s147, 2048
        $region32: #{tpu_custom_call.1} parent=27 // pred_fallthru
          _
        // Predicated region
        $region33: #{tpu_custom_call.1} parent=27 // pred_check
          %p155 = pneg %p62
        $region34: #{tpu_custom_call.1} parent=27 // pred_check_branch
          %157 = sbr.rel (%p155) target = $region36
        $region35: #{tpu_custom_call.1} parent=27 // pred_region
          %158 = dma.done [#allocation6], 128
        $region36: #{tpu_custom_call.1} parent=27 // pred_fallthru
          _
        %s159 = sand.u32 %s28, 1
        %s160 = scalar_lea.sflag [#allocation3], %s159
        %s161 = sand.u32 %s28, 1
        %s162 = smul.addr %s161, 128
        %s163 = scalar_lea.vmem [#allocation2], %s162
        %p164 = pneg %p41
        %p165 = pneg %p38
        %p166 = pneg %p62
        %p167 = pneg %p59
        %p168 = pneg %p88
        %p169 = pneg %p85
        %s170 = sand.u32 %s75, 1
        %s171 = scalar_lea.sflag [#allocation4], %s170
        %s172 = sand.u32 %s75, 1
        %s173 = smul.addr %s172, 16
        %s174 = scalar_lea.vmem [#allocation7], %s173
        %v175 = vld [vmem:[%s150] sm:$0xff]
        %v176 = vld [vmem:[%s150 + $0x8] sm:$0xff]
        %v177 = vld [vmem:[%s150 + $0x10] sm:$0xff]
        %v178 = vld [vmem:[%s150 + $0x18] sm:$0xff]
        %v179 = vld [vmem:[%s150 + $0x20] sm:$0xff]
        %v180 = vld [vmem:[%s150 + $0x28] sm:$0xff]
        %v181 = vld [vmem:[%s150 + $0x30] sm:$0xff]
        %v182 = vld [vmem:[%s150 + $0x38] sm:$0xff]
        %v183 = vld [vmem:[%s150 + $0x40] sm:$0xff]
        %v184 = vld [vmem:[%s150 + $0x48] sm:$0xff]
        %v185 = vld [vmem:[%s150 + $0x50] sm:$0xff]
        %v186 = vld [vmem:[%s150 + $0x58] sm:$0xff]
        %v187 = vld [vmem:[%s150 + $0x60] sm:$0xff]
        %v188 = vld [vmem:[%s150 + $0x68] sm:$0xff]
        %v189 = vld [vmem:[%s150 + $0x70] sm:$0xff]
        %v190 = vld [vmem:[%s150 + $0x78] sm:$0xff]
        %v191 = vld [vmem:[#allocation5] sm:$0xff]
        %vm192 = vcmask 523264
        %v194 = vsel %vm192, %v191, 0
        %196 = vmatprep.subr.mxu0 0.0
        %197 = vmatpush1.msra.mxu0 0.0
        %198 = vmatprep.subr.mxu0 0.0
        %199 = vmatpush1.msra.mxu0 0.0
        %200 = vmatprep.subr.mxu0 0.0
        %201 = vmatpush1.msra.mxu0 0.0
        %202 = vmatprep.subr.mxu0 0.0
        %203 = vmatpush1.msra.mxu0 0.0
        %204 = vmatprep.subr.mxu0 0.0
        %205 = vmatpush1.msra.mxu0 0.0
        %206 = vmatprep.subr.mxu0 0.0
        %207 = vmatpush1.msra.mxu0 0.0
        %208 = vmatprep.subr.mxu0 0.0
        %209 = vmatpush1.msra.mxu0 0.0
        %210 = vmatprep.subr.mxu0 0.0
        %211 = vmatpush1.msra.mxu0 0.0
        %212 = vmatprep.subr.mxu0 %v190
        %213 = vmatpush1.msra.mxu0 %v189
        %214 = vmatprep.subr.mxu0 %v188
        %215 = vmatpush1.msra.mxu0 %v187
        %216 = vmatprep.subr.mxu0 %v186
        %217 = vmatpush1.msra.mxu0 %v185
        %218 = vmatprep.subr.mxu0 %v184
        %219 = vmatpush1.msra.mxu0 %v183
        %220 = vmatprep.subr.mxu0 %v182
        %221 = vmatpush1.msra.mxu0 %v181
        %222 = vmatprep.subr.mxu0 %v180
        %223 = vmatpush1.msra.mxu0 %v179
        %224 = vmatprep.subr.mxu0 %v178
        %225 = vmatpush1.msra.mxu0 %v177
        %226 = vmatprep.subr.mxu0 %v176
        %227 = vmatpush1.msra.mxu0 %v175
        %228 = vmatprep.subr.mxu0 0.0
        %229 = vmatpush2.msra.mxu0 0.0
        %230 = vmatprep.subr.mxu0 0.0
        %231 = vmatpush2.msra.mxu0 0.0
        %232 = vmatprep.subr.mxu0 0.0
        %233 = vmatpush2.msra.mxu0 0.0
        %234 = vmatprep.subr.mxu0 0.0
        %235 = vmatpush2.msra.mxu0 0.0
        %236 = vmatprep.subr.mxu0 0.0
        %237 = vmatpush2.msra.mxu0 0.0
        %238 = vmatprep.subr.mxu0 0.0
        %239 = vmatpush2.msra.mxu0 0.0
        %240 = vmatprep.subr.mxu0 0.0
        %241 = vmatpush2.msra.mxu0 0.0
        %242 = vmatprep.subr.mxu0 0.0
        %243 = vmatpush2.msra.mxu0 0.0
        %244 = vmatprep.subr.mxu0 0.0
        %245 = vmatpush2.msra.mxu0 0.0
        %246 = vmatprep.subr.mxu0 0.0
        %247 = vmatpush2.msra.mxu0 0.0
        %248 = vmatprep.subr.mxu0 0.0
        %249 = vmatpush2.msra.mxu0 0.0
        %250 = vmatprep.subr.mxu0 0.0
        %251 = vmatpush2.msra.mxu0 0.0
        %252 = vmatprep.subr.mxu0 0.0
        %253 = vmatpush2.msra.mxu0 0.0
        %254 = vmatprep.subr.mxu0 0.0
        %255 = vmatpush2.msra.mxu0 0.0
        %256 = vmatprep.subr.mxu0 0.0
        %257 = vmatpush2.msra.mxu0 0.0
        %258 = vmatprep.subr.mxu0 0.0
        %259 = vmatpush2.msra.mxu0 0.0
        %260 = vmatprep.mubr.f32.mxu0 0.0
        %261 = vmatmul.mubr.f32.gmra.mxu0 %v194
        %v262 = vpop.f32.mrf.mxu0
        %v263 = vadd.f32 0.0, %v262
        %v264 = vpop.f32.mrf.mxu0
        %v265 = vadd.f32 0.0, %v264
        %266 = vdwg.mxu0
        %v267 = vadd.f32 %v263, %v265
        %268 = vadd.xlane.f32.xlu0 %v267
        %v269 = vpop.xlane.xlu0 %268
        %v270 = vmul.f32 %v263, %v263
        %v271 = vmul.f32 %v265, %v265
        %v272 = vadd.f32 %v270, %v271
        %273 = vadd.xlane.f32.xlu0 %v272
        %v274 = vpop.xlane.xlu0 %273
        %v275 = vmul.f32 %v269, 0.00390625
        %v276 = vmul.f32 %v274, 0.00390625
        %v277 = vmul.f32 %v275, %v275
        %v278 = vsub.f32 %v276, %v277
        %v279 = vsub.f32 %v263, %v275
        %v280 = vsub.f32 %v265, %v275
        %v281 = vadd.f32 %v278, 1e-05
        %v282 = vrsqrt.pop %v281
        %v283 = vmul.f32 %v279, %v282
        %v284 = vmul.f32 %v280, %v282
        %v285 = vmul.f32 %v283, 0.2
        %v286 = vmul.f32 %v284, 0.2
        %v287 = vmax.f32 %v283, %v285
        %v288 = vmax.f32 %v284, %v286
        %289 = vst [vmem:[%s174] sm:$0xff] %v287
        %290 = vst [vmem:[%s174 + $0x8] sm:$0xff] %v288
        %s291 = sand.u32 %s75, 1
        %s292 = scalar_lea.sflag [#allocation4], %s291
        %s293 = sand.u32 %s75, 1
        %s294 = smul.addr %s293, 16
        %s295 = scalar_lea.vmem [#allocation7], %s294
        // Predicated region
        $region37: #{tpu_custom_call.1} parent=27 // pred_check
          %p296 = pneg %p85
        $region38: #{tpu_custom_call.1} parent=27 // pred_check_branch
          %298 = sbr.rel (%p296) target = $region40
        $region39: #{tpu_custom_call.1} parent=27 // pred_region
          %s300 = ssub.s32 256, 256
          %301 = vsyncadd %s292, %s300
          %s302 = smul.addr %s20, 2
          %s303 = smul.addr %s302, 128
          %s304 = scalar_lea.hbm %s2, %s303
          %s306 = sshll.u32 %s295, 4
          %s307 = int_to_ptr.vmem [resolvable:$true] %s306
          %309 = dma.vmem_to_hbm [thread:$0]  %s307, 256, %s304, %s292
        $region40: #{tpu_custom_call.1} parent=27 // pred_fallthru
          _
      $region28: #{tpu_custom_call.1} parent=5 // pred_fallthru
        _
      %p310 = scmp.le.s32.totalorder 2, %s15
      // Predicated region
      $region41: #{tpu_custom_call.1} parent=5 // pred_check
        %p311 = pneg %p310
      $region42: #{tpu_custom_call.1} parent=5 // pred_check_branch
        %313 = sbr.rel (%p311) target = $region44
      $region43: #{tpu_custom_call.1} parent=5 // pred_region
        %s314 = ssub.s32 %s15, 2
        // Predicated region
        $region45: #{tpu_custom_call.1} parent=43 // pred_check
          %p315 = pneg %p91
        $region46: #{tpu_custom_call.1} parent=43 // pred_check_branch
          %317 = sbr.rel (%p315) target = $region48
        $region47: #{tpu_custom_call.1} parent=43 // pred_region
          %s318 = sand.u32 %s76, 1
          %s319 = scalar_lea.sflag [#allocation4], %s318
          %s320 = sand.u32 %s76, 1
          %s321 = smul.addr %s320, 16
          %s322 = scalar_lea.vmem [#allocation7], %s321
          %323 = dma.done %s319, 256
        $region48: #{tpu_custom_call.1} parent=43 // pred_fallthru
          _
      $region44: #{tpu_custom_call.1} parent=5 // pred_fallthru
        _
    $region6: #{tpu_custom_call.1} parent=1 // loop_footer
      %s19 = sadd.s32 1, %s15
    $region7: #{tpu_custom_call.1} parent=1 // loop_footer_branch
      %14 = sbr.rel target = $region3
    $region8: #{tpu_custom_call.1} parent=1 // loop_exit
      _
    %324 = vsyncpa [#allocation3], 1
    %s325 = scalar_lea.sflag [#allocation3], 1
    %326 = vsyncpa %s325, 1
    %327 = vsyncpa [#allocation6], 1
    %328 = vsyncpa [#allocation4], 1
    %s329 = scalar_lea.sflag [#allocation4], 1
    %330 = vsyncpa %s329, 1

</llo_original>
